<compile_context>
chip_gen: v6e
topology: v6e:2x2x1
jax: 0.10.0
libtpu: 0.0.40
codegen_flags: <defaults>
</compile_context>

<pallas_src>
import jax
import jax.numpy as jnp
from jax.experimental import pallas as pl
from jax.experimental.pallas import tpu as pltpu


def _round_up(x, m):
    return ((x + m - 1) // m) * m


def _largest_divisor_tile(total, target, quantum=128):
    """Largest multiple of `quantum` dividing `total` and <= target.

    `total` must itself be a multiple of `quantum` (so `quantum` always works).
    """
    best = quantum
    t = quantum
    limit = min(total, max(target, quantum))
    while t <= limit:
        if total % t == 0:
            best = t
        t += quantum
    return best


def _pick_row_tile(total, target, quantum):
    """Largest multiple of `quantum` dividing `total` and <= target."""
    best = min(total, quantum)
    t = quantum
    limit = min(total, max(target, quantum))
    while t <= limit:
        if total % t == 0:
            best = t
        t += quantum
    return best


# --------------------------------------------------------------------------- #
# Kernels
# --------------------------------------------------------------------------- #
def _linear_kernel_acc(x_ref, w_ref, b_ref, o_ref, acc_ref):
    """Grid = (node_tiles, dout_tiles, k_tiles); K last / 'arbitrary'."""
    k = pl.program_id(2)

    @pl.when(k == 0)
    def _():
        acc_ref[...] = jnp.zeros_like(acc_ref)

    acc_ref[...] += jnp.dot(
        x_ref[...].astype(w_ref.dtype),       # in-kernel cast (no wrapper pass)
        w_ref[...],
        preferred_element_type=jnp.float32,
    )

    @pl.when(k == pl.num_programs(2) - 1)
    def _():
        o_ref[...] = (acc_ref[...] + b_ref[...].astype(jnp.float32)).astype(
            o_ref.dtype
        )


def _linear_kernel_noacc(x_ref, w_ref, b_ref, o_ref):
    """Single-K fast path: no accumulator scratch, direct store."""
    acc = jnp.dot(
        x_ref[...].astype(w_ref.dtype),
        w_ref[...],
        preferred_element_type=jnp.float32,
    )
    o_ref[...] = (acc + b_ref[...].astype(jnp.float32)).astype(o_ref.dtype)


# --------------------------------------------------------------------------- #
# Parameter prep (one-time, NOT per forward call)
# --------------------------------------------------------------------------- #
def prepare_dummy_gnn_params(weight, bias, compute_dtype=None):
    """weight: [d_out, d_in] (nn.Linear layout) -> padded [d_in_p, d_out_p]
       bias:   [d_out]                          -> padded [1, d_out_p]
    Zero-padding to multiples of 128 keeps the math exact (sliced off later)
    while making the output lane-dense and the MXU tiles well-shaped."""
    d_out, d_in = weight.shape
    d_in_p = _round_up(d_in, 128)
    d_out_p = _round_up(d_out, 128)
    w_t = (
        jnp.zeros((d_in_p, d_out_p), weight.dtype)
        .at[:d_in, :d_out]
        .set(weight.T)
    )
    if compute_dtype is not None:
        w_t = w_t.astype(compute_dtype)   # e.g. bf16 on v6e/v7x
    b2d = jnp.zeros((1, d_out_p), jnp.float32).at[0, :d_out].set(
        bias.astype(jnp.float32)
    )
    return w_t, b2d, d_out


# --------------------------------------------------------------------------- #
# Forward
# --------------------------------------------------------------------------- #
def dummy_gnn_forward(
    x,
    w_t_pad,
    b_pad,
    d_out,
    edge_index=None,
    edge_features=None,
    *,
    node_tile=None,
    k_tile=512,
    d_out_tile=512,
):
    """Pallas implementation of DummyGNN.forward (== nn.Linear applied to x).

    x:        [num_nodes, input_dim]
    w_t_pad:  [d_in_p, d_out_p]   from prepare_dummy_gnn_params
    b_pad:    [1, d_out_p]        from prepare_dummy_gnn_params
    edge_index / edge_features: unused (matches the reference forward).
    """
    n, d_in = x.shape
    d_in_p, d_out_p = w_t_pad.shape
    out_dtype = x.dtype

    in_bytes = jnp.dtype(x.dtype).itemsize
    w_bytes = jnp.dtype(w_t_pad.dtype).itemsize
    b_bytes = jnp.dtype(b_pad.dtype).itemsize
    out_bytes = jnp.dtype(out_dtype).itemsize

    # --- generation-aware VMEM budget ---------------------------------------
    vmem_cap = 64 << 20                       # conservative default (v7x)
    try:
        info = pltpu.get_tpu_info()
        vmem_cap = int(getattr(info, "vmem_capacity_bytes", vmem_cap))
    except Exception:
        pass
    # ~96 MiB on v5e/v6e (128 MiB physical), ~48 MiB on v7x (64 MiB physical).
    vmem_budget = min(int(vmem_cap * 3 // 4), 100 << 20)

    if node_tile is None:
        node_tile = 512 if vmem_cap >= (96 << 20) else 256

    # --- node-axis padding: sublane quantum only, not a multiple of tn -------
    row_q = max(8, 32 // in_bytes)            # 8 for f32, 16 for bf16, ...
    n_pad = _round_up(n, row_q)
    tn = _pick_row_tile(n_pad, node_tile, row_q)
    if tn < 64 and n_pad > node_tile:
        # avoid degenerate tiny row tiles on awkward n: accept a bit more pad
        n_pad = _round_up(n, node_tile)
        tn = node_tile

    # --- tile-fit helper ------------------------------------------------------
    def tiles_fit(tn_, tk_, tno_, with_acc):
        need = (
            2 * tn_ * tk_ * in_bytes          # x   (double-buffered)
            + 2 * tk_ * tno_ * w_bytes        # W
            + 2 * tno_ * b_bytes              # bias
            + 2 * tn_ * tno_ * out_bytes      # out
        )
        if with_acc:
            need += tn_ * tno_ * 4            # f32 accumulator scratch
        return need

    # --- pick (tk, tno): W resident if it fits, else tile K and d_out --------
    w_total_bytes = d_in_p * d_out_p * w_bytes
    full_w_ok = (
        w_total_bytes <= (16 << 20)
        and tiles_fit(tn, d_in_p, d_out_p, with_acc=False) <= vmem_budget
    )
    if full_w_ok:
        tk, tno, nk = d_in_p, d_out_p, 1
    else:
        tk = _largest_divisor_tile(d_in_p, k_tile)        # honor k_tile
        nk = d_in_p // tk
        tno = d_out_p
        if d_out_p > d_out_tile or tiles_fit(tn, tk, tno, nk > 1) > vmem_budget:
            tno = _largest_divisor_tile(d_out_p, d_out_tile)
        # shrink (tno -> tk -> tn) until the double-buffered tiles fit VMEM
        while tiles_fit(tn, tk, tno, nk > 1) > vmem_budget:
            if tno > 128:
                tno = _largest_divisor_tile(d_out_p, tno // 2)
            elif tk > 128:
                tk = _largest_divisor_tile(d_in_p, tk // 2)
                nk = d_in_p // tk
            elif tn > row_q:
                tn = _pick_row_tile(n_pad, max(tn // 2, row_q), row_q)
            else:
                break

    ni = n_pad // tn
    nj = d_out_p // tno
    # Give v7x's second TensorCore something to do when the whole problem is
    # one grid tile but big enough that the extra grid step is negligible.
    if ni * nj == 1 and n_pad >= 256 and (n_pad // 2) % row_q == 0:
        tn = n_pad // 2
        ni = 2

    # --- pad x only if needed (single fused jnp.pad; no copy otherwise) ------
    if (n_pad, d_in_p) != (n, d_in):
        x_p = jnp.pad(x, ((0, n_pad - n), (0, d_in_p - d_in)))
    else:
        x_p = x

    # --- cost estimate reflecting real re-streaming --------------------------
    x_streams = 1 if nk == 1 else nj          # x tile re-read per d_out tile
    w_streams = 1 if (nk == 1 and nj == 1) else ni
    cost = pl.CostEstimate(
        flops=2 * n_pad * d_in_p * d_out_p,
        transcendentals=0,
        bytes_accessed=(
            x_streams * n_pad * d_in_p * in_bytes
            + w_streams * d_in_p * d_out_p * w_bytes
            + n_pad * d_out_p * out_bytes
            + ni * d_out_p * b_bytes
        ),
    )

    vmem_need = tiles_fit(tn, tk, tno, with_acc=(nk > 1))
    vmem_limit = min(max(2 * vmem_need, 16 << 20), vmem_budget)
    vmem_limit = max(vmem_limit, vmem_need + (1 << 20))   # never below tile need

    # --- build the pallas_call -----------------------------------------------
    if nk == 1:
        grid_spec = pltpu.PrefetchScalarGridSpec(
            num_scalar_prefetch=0,
            grid=(ni, nj),
            in_specs=[
                pl.BlockSpec((tn, d_in_p), lambda i, j: (i, 0)),      # x
                pl.BlockSpec((d_in_p, tno), lambda i, j: (0, j)),     # W^T panel
                pl.BlockSpec((1, tno), lambda i, j: (0, j)),          # bias
            ],
            out_specs=pl.BlockSpec((tn, tno), lambda i, j: (i, j)),
        )
        kernel = _linear_kernel_noacc
        dims = ("parallel", "parallel")
    else:
        grid_spec = pltpu.PrefetchScalarGridSpec(
            num_scalar_prefetch=0,
            grid=(ni, nj, nk),
            in_specs=[
                pl.BlockSpec((tn, tk), lambda i, j, k: (i, k)),       # x
                pl.BlockSpec((tk, tno), lambda i, j, k: (k, j)),      # W^T panel
                pl.BlockSpec((1, tno), lambda i, j, k: (0, j)),       # bias
            ],
            out_specs=pl.BlockSpec((tn, tno), lambda i, j, k: (i, j)),
            scratch_shapes=[pltpu.VMEM((tn, tno), jnp.float32)],
        )
        kernel = _linear_kernel_acc
        dims = ("parallel", "parallel", "arbitrary")

    out_p = pl.pallas_call(
        kernel,
        out_shape=jax.ShapeDtypeStruct((n_pad, d_out_p), out_dtype),
        grid_spec=grid_spec,
        compiler_params=pltpu.CompilerParams(
            dimension_semantics=dims,
            vmem_limit_bytes=int(vmem_limit),
        ),
        cost_estimate=cost,
    )(x_p, w_t_pad, b_pad)

    return out_p[:n, :d_out]


# --------------------------------------------------------------------------- #
# Init (nn.Linear-style, deterministic)
# --------------------------------------------------------------------------- #
def init_dummy_gnn_params(key, input_dim, hidden_dim, output_dim):
    """hidden_dim mirrors the module signature but (as in the reference
    __init__) creates no parameters."""
    kw, kb = jax.random.split(key)
    bound = 1.0 / jnp.sqrt(jnp.float32(input_dim))
    weight = jax.random.uniform(
        kw, (output_dim, input_dim), jnp.float32, minval=-bound, maxval=bound
    )
    bias = jax.random.uniform(
        kb, (output_dim,), jnp.float32, minval=-bound, maxval=bound
    )
    return weight, bias


if __name__ == "__main__":
    key = jax.random.PRNGKey(0)
    k_x, k_p, k_e = jax.random.split(key, 3)

    num_nodes = 8
    input_dim = 16
    hidden_dim = 32   # unused by the module's forward, kept for signature parity
    output_dim = 8

    x = jax.random.normal(k_x, (num_nodes, input_dim), jnp.float32)
    # edge_index: [2, num_edges] — ignored by forward, built only for fidelity.
    edge_index = jax.random.randint(k_e, (2, 12), 0, num_nodes)

    weight, bias = init_dummy_gnn_params(k_p, input_dim, hidden_dim, output_dim)
    # One-time prep: transpose + pad.  Pass compute_dtype=jnp.bfloat16 on
    # v6e/v7x when end-to-end bf16 precision is acceptable (then skip the
    # f32-tolerance assert below).
    w_prep, b_prep, d_out = prepare_dummy_gnn_params(weight, bias)

    out = dummy_gnn_forward(x, w_prep, b_prep, d_out, edge_index)
    out = jax.block_until_ready(out)

    # Sanity check against plain-JAX reference of nn.Linear semantics.
    ref = x @ weight.T + bias
    assert out.shape == (num_nodes, output_dim)
    assert jnp.allclose(out, ref, atol=1e-5, rtol=1e-5)

    print("KERNEL_OK")
</pallas_src>

<mosaic_0001>
module attributes {stable_mosaic.version = 11 : i64} {
  func.func @_linear_kernel_noacc(%arg0: i32, %arg1: i32, %arg2: memref<8x128xf32, #tpu.memory_space<vmem>>, %arg3: memref<128x128xf32, #tpu.memory_space<vmem>>, %arg4: memref<1x128xf32, #tpu.memory_space<vmem>>, %arg5: memref<8x128xf32, #tpu.memory_space<vmem>>) attributes {dimension_semantics = [#tpu.dimension_semantics<parallel>, #tpu.dimension_semantics<parallel>], iteration_bounds = array<i64: 1, 1>, scalar_prefetch = 0 : i64, scratch_operands = 0 : i64, tpu.core_type = #tpu.core_type<tc>, window_params = [{transform_indices = @transform_0, window_bounds = array<i64: 8, 128>}, {transform_indices = @transform_1, window_bounds = array<i64: 128, 128>}, {transform_indices = @transform_2, window_bounds = array<i64: 1, 128>}, {transform_indices = @transform_3, window_bounds = array<i64: 8, 128>}]} {
    %c0 = arith.constant 0 : index
    %c0_0 = arith.constant 0 : index
    %0 = vector.load %arg2[%c0, %c0_0] : memref<8x128xf32, #tpu.memory_space<vmem>>, vector<8x128xf32>
    %c0_1 = arith.constant 0 : index
    %c0_2 = arith.constant 0 : index
    %1 = vector.load %arg3[%c0_1, %c0_2] : memref<128x128xf32, #tpu.memory_space<vmem>>, vector<128x128xf32>
    %cst = arith.constant dense<0.000000e+00> : vector<8x128xf32>
    %2 = tpu.matmul %0, %1, %cst {dimension_numbers = #tpu.dot_dimension_numbers<[1], [0], [0], [1], [0, 0, 1, 1], [], []>} : vector<8x128xf32>, vector<128x128xf32>, vector<8x128xf32> -> vector<8x128xf32>
    %c0_3 = arith.constant 0 : index
    %c0_4 = arith.constant 0 : index
    %3 = vector.load %arg4[%c0_3, %c0_4] : memref<1x128xf32, #tpu.memory_space<vmem>>, vector<1x128xf32>
    %4 = vector.broadcast %3 : vector<1x128xf32> to vector<8x128xf32>
    %5 = arith.addf %2, %4 : vector<8x128xf32>
    %c0_5 = arith.constant 0 : index
    %c0_6 = arith.constant 0 : index
    %6 = vector.load %arg5[%c0_5, %c0_6] : memref<8x128xf32, #tpu.memory_space<vmem>>, vector<8x128xf32>
    tpu.vector_store %arg5[%c0_5, %c0_6], %5 {strides = array<i32>} : memref<8x128xf32, #tpu.memory_space<vmem>>, vector<8x128xf32>,
    return
  }
  func.func @transform_0(%arg0: i32, %arg1: i32) -> (i32, i32) {
    %c0_i32 = arith.constant 0 : i32
    %c0_i32_0 = arith.constant 0 : i32
    return %arg0, %c0_i32 : i32, i32
  }
  func.func @transform_1(%arg0: i32, %arg1: i32) -> (i32, i32) {
    %c0_i32 = arith.constant 0 : i32
    %c0_i32_0 = arith.constant 0 : i32
    return %c0_i32, %arg1 : i32, i32
  }
  func.func @transform_2(%arg0: i32, %arg1: i32) -> (i32, i32) {
    %c0_i32 = arith.constant 0 : i32
    %c0_i32_0 = arith.constant 0 : i32
    return %c0_i32, %arg1 : i32, i32
  }
  func.func @transform_3(%arg0: i32, %arg1: i32) -> (i32, i32) {
    %c0_i32 = arith.constant 0 : i32
    return %arg0, %arg1 : i32, i32
  }
}

</mosaic_0001>

<llo_original>
// kernel: tpu_custom_call.1
$region0: #{tpu_custom_call.1}
  #allocation0 [shape = 'u32[]', space=smem, size = 0x4, offset = 0x4, fixed_abs, tag = 'smem constant byte address 0x4 - core index']
  #allocation1 [shape = 'u32[144,128]{1,0:T(1,128)}', space=vmem, size = 0x12000, scoped, tag = 'internal scratch']
  %s0 = inlined_call_operand.hbm [shape: f32[8,128], index: 0, kind: input, shape index: {}]
  %s1 = inlined_call_operand.hbm [shape: f32[128,128], index: 1, kind: input, shape index: {}]
  %s2 = inlined_call_operand.vmem [shape: f32[1,128], index: 2, kind: input, shape index: {}]
  %s3 = inlined_call_operand.hbm [shape: f32[8,128], index: 3, kind: output, shape index: {}]
  %s4 = sld [smem:[#allocation0]]
  $region30: #{tpu_custom_call.1} parent=0
    _
  %s6 = ssub.s32 1, %s4
  %s7 = scalar_select 0, %s6, %s4
  $region1: #{tpu_custom_call.1} parent=0
    #allocation2 [shape = 'u8[4096]{0}', space=vmem, size = 0x1000, scoped, tag = 'input window, operand 0, single buffered']
    #allocation3 [shape = 's32[1]{0}', space=sflag, size = 0x4, scoped, tag = 'scoped memory for tpu_custom_call.1']
    #allocation4 [shape = 's32[1]{0}', space=sflag, size = 0x4, scoped, tag = 'scoped memory for tpu_custom_call.1']
    #allocation5 [shape = 'u8[65536]{0}', space=vmem, size = 0x10000, scoped, tag = 'input window, operand 1, single buffered']
    #allocation6 [shape = 's32[1]{0}', space=sflag, size = 0x4, scoped, tag = 'scoped memory for tpu_custom_call.1']
    #allocation7 [shape = 'u8[4096]{0}', space=vmem, size = 0x1000, scoped, tag = 'output window, operand 0, single buffered']
    %8 = vsyncpa [#allocation3], 0
    %9 = vsyncpa [#allocation6], 0
    %10 = vsyncpa [#allocation4], 0
    // Predicated region
    $region2: #{tpu_custom_call.1} parent=1 // pred_check
      _
    $region3: #{tpu_custom_call.1} parent=1 // pred_check_branch
      %12 = sbr.rel (0) target = $region5
    $region4: #{tpu_custom_call.1} parent=1 // pred_region
      %s14 = ssub.s32 128, 128
      %15 = vsyncadd [#allocation3], %s14
      %s17 = sshll.u32 [#allocation2], 4
      %s18 = int_to_ptr.vmem [resolvable:$true] %s17
      %20 = dma.hbm_to_vmem [thread:$0]  %s0, 128, %s18, [#allocation3]
    $region5: #{tpu_custom_call.1} parent=1 // pred_fallthru
      _
    // Predicated region
    $region6: #{tpu_custom_call.1} parent=1 // pred_check
      _
    $region7: #{tpu_custom_call.1} parent=1 // pred_check_branch
      %22 = sbr.rel (0) target = $region9
    $region8: #{tpu_custom_call.1} parent=1 // pred_region
      %s24 = ssub.s32 2048, 2048
      %25 = vsyncadd [#allocation6], %s24
      %s26 = sshll.u32 [#allocation5], 4
      %s27 = int_to_ptr.vmem [resolvable:$true] %s26
      %32 = dma.hbm_to_vmem [thread:$0]  %s1, 2048, %s27, [#allocation6], 128, 128, 8
    $region9: #{tpu_custom_call.1} parent=1 // pred_fallthru
      _
    // Predicated region
    $region10: #{tpu_custom_call.1} parent=1 // pred_check
      _
    $region11: #{tpu_custom_call.1} parent=1 // pred_check_branch
      %34 = sbr.rel (0) target = $region13
    $region12: #{tpu_custom_call.1} parent=1 // pred_region
      _
    $region13: #{tpu_custom_call.1} parent=1 // pred_fallthru
      _
    // Predicated region
    $region14: #{tpu_custom_call.1} parent=1 // pred_check
      _
    $region15: #{tpu_custom_call.1} parent=1 // pred_check_branch
      %36 = sbr.rel (0) target = $region17
    $region16: #{tpu_custom_call.1} parent=1 // pred_region
      %37 = dma.done [#allocation3], 128
    $region17: #{tpu_custom_call.1} parent=1 // pred_fallthru
      _
    // Predicated region
    $region18: #{tpu_custom_call.1} parent=1 // pred_check
      _
    $region19: #{tpu_custom_call.1} parent=1 // pred_check_branch
      %39 = sbr.rel (0) target = $region21
    $region20: #{tpu_custom_call.1} parent=1 // pred_region
      %40 = dma.done [#allocation6], 2048
    $region21: #{tpu_custom_call.1} parent=1 // pred_fallthru
      _
    %v41 = vld [vmem:[#allocation2] sm:$0xff]
    %v42 = vld [vmem:[#allocation5] sm:$0xff]
    %v43 = vld [vmem:[#allocation5 + $0x8] sm:$0xff]
    %v44 = vld [vmem:[#allocation5 + $0x10] sm:$0xff]
    %v45 = vld [vmem:[#allocation5 + $0x18] sm:$0xff]
    %v46 = vld [vmem:[#allocation5 + $0x20] sm:$0xff]
    %v47 = vld [vmem:[#allocation5 + $0x28] sm:$0xff]
    %v48 = vld [vmem:[#allocation5 + $0x30] sm:$0xff]
    %v49 = vld [vmem:[#allocation5 + $0x38] sm:$0xff]
    %v50 = vld [vmem:[#allocation5 + $0x40] sm:$0xff]
    %v51 = vld [vmem:[#allocation5 + $0x48] sm:$0xff]
    %v52 = vld [vmem:[#allocation5 + $0x50] sm:$0xff]
    %v53 = vld [vmem:[#allocation5 + $0x58] sm:$0xff]
    %v54 = vld [vmem:[#allocation5 + $0x60] sm:$0xff]
    %v55 = vld [vmem:[#allocation5 + $0x68] sm:$0xff]
    %v56 = vld [vmem:[#allocation5 + $0x70] sm:$0xff]
    %v57 = vld [vmem:[#allocation5 + $0x78] sm:$0xff]
    %v58 = vld [vmem:[%s2] sm:$0x1]
    %v60 = vlaneseq
    %v61 = vshrl.u32 %v60, 7
    %v62 = vsub.s32 0, %v61
    %v63 = vrot.slane %v58, %v62
    %65 = vmatprep.subr.mxu0 0.0
    %66 = vmatpush1.msra.mxu0 %v57
    %67 = vmatprep.subr.mxu0 0.0
    %68 = vmatpush1.msra.mxu0 %v56
    %69 = vmatprep.subr.mxu0 0.0
    %70 = vmatpush1.msra.mxu0 %v55
    %71 = vmatprep.subr.mxu0 0.0
    %72 = vmatpush1.msra.mxu0 %v54
    %73 = vmatprep.subr.mxu0 0.0
    %74 = vmatpush1.msra.mxu0 %v53
    %75 = vmatprep.subr.mxu0 0.0
    %76 = vmatpush1.msra.mxu0 %v52
    %77 = vmatprep.subr.mxu0 0.0
    %78 = vmatpush1.msra.mxu0 %v51
    %79 = vmatprep.subr.mxu0 0.0
    %80 = vmatpush1.msra.mxu0 %v50
    %81 = vmatprep.subr.mxu0 0.0
    %82 = vmatpush1.msra.mxu0 %v49
    %83 = vmatprep.subr.mxu0 0.0
    %84 = vmatpush1.msra.mxu0 %v48
    %85 = vmatprep.subr.mxu0 0.0
    %86 = vmatpush1.msra.mxu0 %v47
    %87 = vmatprep.subr.mxu0 0.0
    %88 = vmatpush1.msra.mxu0 %v46
    %89 = vmatprep.subr.mxu0 0.0
    %90 = vmatpush1.msra.mxu0 %v45
    %91 = vmatprep.subr.mxu0 0.0
    %92 = vmatpush1.msra.mxu0 %v44
    %93 = vmatprep.subr.mxu0 0.0
    %94 = vmatpush1.msra.mxu0 %v43
    %95 = vmatprep.subr.mxu0 0.0
    %96 = vmatpush1.msra.mxu0 %v42
    %97 = vmatprep.subr.mxu0 0.0
    %98 = vmatpush2.msra.mxu0 0.0
    %99 = vmatprep.subr.mxu0 0.0
    %100 = vmatpush2.msra.mxu0 0.0
    %101 = vmatprep.subr.mxu0 0.0
    %102 = vmatpush2.msra.mxu0 0.0
    %103 = vmatprep.subr.mxu0 0.0
    %104 = vmatpush2.msra.mxu0 0.0
    %105 = vmatprep.subr.mxu0 0.0
    %106 = vmatpush2.msra.mxu0 0.0
    %107 = vmatprep.subr.mxu0 0.0
    %108 = vmatpush2.msra.mxu0 0.0
    %109 = vmatprep.subr.mxu0 0.0
    %110 = vmatpush2.msra.mxu0 0.0
    %111 = vmatprep.subr.mxu0 0.0
    %112 = vmatpush2.msra.mxu0 0.0
    %113 = vmatprep.subr.mxu0 0.0
    %114 = vmatpush2.msra.mxu0 0.0
    %115 = vmatprep.subr.mxu0 0.0
    %116 = vmatpush2.msra.mxu0 0.0
    %117 = vmatprep.subr.mxu0 0.0
    %118 = vmatpush2.msra.mxu0 0.0
    %119 = vmatprep.subr.mxu0 0.0
    %120 = vmatpush2.msra.mxu0 0.0
    %121 = vmatprep.subr.mxu0 0.0
    %122 = vmatpush2.msra.mxu0 0.0
    %123 = vmatprep.subr.mxu0 0.0
    %124 = vmatpush2.msra.mxu0 0.0
    %125 = vmatprep.subr.mxu0 0.0
    %126 = vmatpush2.msra.mxu0 0.0
    %127 = vmatprep.subr.mxu0 0.0
    %128 = vmatpush2.msra.mxu0 0.0
    %129 = vmatprep.mubr.f32.mxu0 0.0
    %130 = vmatmul.mubr.f32.gmra.mxu0 %v41
    %v131 = vpop.f32.mrf.mxu0
    %v132 = vadd.f32 %v63, %v131
    %v133 = vpop.f32.mrf.mxu0
    %134 = vdwg.mxu0
    %135 = vst [vmem:[#allocation7] sm:$0xff] %v132
    // Predicated region
    $region22: #{tpu_custom_call.1} parent=1 // pred_check
      _
    $region23: #{tpu_custom_call.1} parent=1 // pred_check_branch
      %137 = sbr.rel (0) target = $region25
    $region24: #{tpu_custom_call.1} parent=1 // pred_region
      %s139 = ssub.s32 128, 128
      %140 = vsyncadd [#allocation4], %s139
      %s142 = sshll.u32 [#allocation7], 4
      %s143 = int_to_ptr.vmem [resolvable:$true] %s142
      %145 = dma.vmem_to_hbm [thread:$0]  %s143, 128, %s3, [#allocation4]
    $region25: #{tpu_custom_call.1} parent=1 // pred_fallthru
      _
    // Predicated region
    $region26: #{tpu_custom_call.1} parent=1 // pred_check
      _
    $region27: #{tpu_custom_call.1} parent=1 // pred_check_branch
      %147 = sbr.rel (0) target = $region29
    $region28: #{tpu_custom_call.1} parent=1 // pred_region
      %148 = dma.done [#allocation4], 128
    $region29: #{tpu_custom_call.1} parent=1 // pred_fallthru
      _
    %149 = vsyncpa [#allocation3], 1
    %150 = vsyncpa [#allocation6], 1
    %151 = vsyncpa [#allocation4], 1

</llo_original>
